<compile_context>
chip_gen: v6e
topology: v6e:2x2x1
jax: 0.10.0
libtpu: 0.0.40
codegen_flags: <defaults>
</compile_context>

<pallas_src>
import functools

import jax
import jax.numpy as jnp
from jax.experimental import pallas as pl
from jax.experimental.pallas import tpu as pltpu


def _cln_kernel(x_ref, sb_ref, o_ref, *, eps):
    # x_ref:  (Bb, C, Tt)    tile of x in native (B, C, T) layout
    # sb_ref: (Bb, 2, C, 1)  packed conditional [scale, bias] for these rows (f32)
    # o_ref:  (Bb, C, Tt)
    x = x_ref[...].astype(jnp.float32)                    # (Bb, C, Tt)

    # LayerNorm over the channel axis (biased variance, no elementwise affine),
    # statistics in f32 regardless of the input dtype.
    mean = jnp.mean(x, axis=1, keepdims=True)              # (Bb, 1, Tt) sublane reduce
    xc = x - mean
    var = jnp.mean(xc * xc, axis=1, keepdims=True)         # (Bb, 1, Tt)
    xn = xc * jax.lax.rsqrt(var + eps)                     # (Bb, C, Tt)

    sb = sb_ref[...]                                       # (Bb, 2, C, 1) f32
    scale = sb[:, 0]                                       # (Bb, C, 1) -> bcast over lanes
    bias = sb[:, 1]                                        # (Bb, C, 1)
    o_ref[...] = (xn * scale + bias).astype(o_ref.dtype)


def _cdiv(a, b):
    return (a + b - 1) // b


def _round_up(n, m):
    return ((n + m - 1) // m) * m


def _vmem_config():
    """(physical_vmem, per-step tile budget, vmem_limit_bytes), generation-aware."""
    try:
        cap = int(pltpu.get_tpu_info().vmem_capacity_bytes)
    except Exception:
        cap = 64 << 20                       # conservative: v7x-class per-TC VMEM
    if cap <= (64 << 20):                    # v7x: 64 MiB per TensorCore
        return cap, 20 << 20, 44 << 20
    return cap, 32 << 20, 64 << 20           # v5e / v6e: 128 MiB


def _choose_tiles(B, C, T, itemsize, tile_budget):
    """Pick (b_tile, t_tile): lane-dense T tile + optional batch blocking."""
    # Lane extent of a full-T block (full-extent block is always legal if T<=128).
    full_t = T if T <= 128 else _round_up(T, 128)
    # VMEM bytes per (batch row x lane column): double-buffered in + out tiles in
    # the native dtype plus ~4 f32-sized temporaries live in the kernel body.
    per_bc_lane = C * (4 * itemsize + 4 * 4)
    max_lanes = max(128, (tile_budget // per_bc_lane) // 128 * 128)
    t_tile = min(full_t, max(128, min(max_lanes, 2048)))
    n_t = _cdiv(T, t_tile)

    # Fold batch rows while per-step traffic is small, VMEM allows it, and the
    # grid keeps >= 2 total steps for megacore sharding.
    b_tile = 1
    while (2 * b_tile <= B
           and 2 * b_tile * per_bc_lane * t_tile <= tile_budget
           and _cdiv(B, 2 * b_tile) * n_t >= 2
           and b_tile * C * t_tile * itemsize < (1 << 20)):
        b_tile *= 2
    return b_tile, t_tile


def _x_block_spec(block_shape, index_map, deep_buffer):
    if deep_buffer:
        try:
            return pl.BlockSpec(block_shape, index_map,
                                pipeline_mode=pl.Buffered(3))
        except Exception:
            pass                              # older jax: fall back to default depth
    return pl.BlockSpec(block_shape, index_map)


def conditional_layer_norm(x, utt_emb, w_scale, b_scale, w_bias, b_bias,
                           *, epsilon=1e-6, b_tile=None, t_tile=None):
    """x: (B, C, T); utt_emb: (B, U) or (B, U, 1).

    w_scale / w_bias are stored as (U, C) (torch Linear weight transposed),
    b_scale / b_bias as (C,).  Returns (B, C, T), same dtype as x.
    """
    if utt_emb.ndim == 3:
        utt_emb = jnp.squeeze(utt_emb, axis=-1)

    B, C, T = x.shape

    # Hoisted conditional affine params: one tiny XLA matmul, packed into a
    # single (B, 2, C, 1) f32 array ([:, 0] = scale, [:, 1] = bias).
    utt_f32 = utt_emb.astype(jnp.float32)
    scale = utt_f32 @ w_scale.astype(jnp.float32) + b_scale.astype(jnp.float32)
    bias = utt_f32 @ w_bias.astype(jnp.float32) + b_bias.astype(jnp.float32)
    sb = jnp.stack([scale, bias], axis=1)[..., None]          # (B, 2, C, 1)

    vmem_cap, tile_budget, vmem_limit = _vmem_config()
    auto_b, auto_t = _choose_tiles(B, C, T, x.dtype.itemsize, tile_budget)
    if b_tile is None:
        b_tile = auto_b
    if t_tile is None:
        t_tile = auto_t
    b_tile = max(1, min(b_tile, B))
    t_tile = T if T <= 128 else min(_round_up(t_tile, 128), _round_up(T, 128))

    n_b = _cdiv(B, b_tile)
    n_t = _cdiv(T, t_tile)
    grid = (n_b, n_t)                                         # B outer, T inner

    # Deeper input pipelining only when VMEM is plentiful (v5e/v6e) and the
    # grid has many small tiles along T.
    deep_buffer = (vmem_cap > (64 << 20)) and (t_tile < 512) and (n_t >= 4)

    kernel = functools.partial(_cln_kernel, eps=epsilon)

    out = pl.pallas_call(
        kernel,
        out_shape=jax.ShapeDtypeStruct((B, C, T), x.dtype),
        grid=grid,
        in_specs=[
            _x_block_spec((b_tile, C, t_tile), lambda b, t: (b, 0, t),
                          deep_buffer),                                   # x
            pl.BlockSpec((b_tile, 2, C, 1), lambda b, t: (b, 0, 0, 0)),   # [scale,bias]
        ],
        out_specs=pl.BlockSpec((b_tile, C, t_tile), lambda b, t: (b, 0, t)),
        compiler_params=pltpu.CompilerParams(
            dimension_semantics=("parallel", "parallel"),
            vmem_limit_bytes=vmem_limit),
    )(x, sb)

    return out


def _reference(x, utt_emb, w_scale, b_scale, w_bias, b_bias, epsilon=1e-6):
    if utt_emb.ndim == 3:
        utt_emb = jnp.squeeze(utt_emb, axis=-1)
    xt = jnp.transpose(x, (0, 2, 1)).astype(jnp.float32)      # (B, T, C)
    mean = jnp.mean(xt, axis=-1, keepdims=True)
    var = jnp.mean((xt - mean) ** 2, axis=-1, keepdims=True)
    xn = (xt - mean) / jnp.sqrt(var + epsilon)
    scale = (utt_emb.astype(jnp.float32) @ w_scale + b_scale)[:, None, :]
    bias = (utt_emb.astype(jnp.float32) @ w_bias + b_bias)[:, None, :]
    return jnp.transpose(xn * scale + bias, (0, 2, 1)).astype(x.dtype)


if __name__ == "__main__":
    embedding_dim = 32   # C
    utt_emb_dim = 16     # U
    B, T = 2, 256

    key = jax.random.PRNGKey(0)
    kx, ku, kws, kbs, kwb, kbb, kx2, ku2 = jax.random.split(key, 8)
    x = jax.random.normal(kx, (B, embedding_dim, T), dtype=jnp.float32)
    utt_emb = jax.random.normal(ku, (B, utt_emb_dim), dtype=jnp.float32)

    # Case 1: default init per ConditionalLayerNorm.reset_parameters()
    #   W_scale.weight = 0, W_scale.bias = 1, W_bias.weight = 0, W_bias.bias = 0
    # (weights stored as (U, C), i.e. torch Linear weight transposed)
    w_scale0 = jnp.zeros((utt_emb_dim, embedding_dim), dtype=jnp.float32)
    b_scale0 = jnp.ones((embedding_dim,), dtype=jnp.float32)
    w_bias0 = jnp.zeros((utt_emb_dim, embedding_dim), dtype=jnp.float32)
    b_bias0 = jnp.zeros((embedding_dim,), dtype=jnp.float32)

    out0 = conditional_layer_norm(x, utt_emb, w_scale0, b_scale0, w_bias0,
                                  b_bias0, epsilon=1e-6)
    out0 = jax.block_until_ready(out0)
    ref0 = _reference(x, utt_emb, w_scale0, b_scale0, w_bias0, b_bias0)
    assert out0.shape == (B, embedding_dim, T)
    assert jnp.allclose(out0, ref0, atol=1e-5, rtol=1e-5)

    # Case 2: random weights to exercise the conditional scale/bias path.
    w_scale1 = 0.1 * jax.random.normal(kws, (utt_emb_dim, embedding_dim),
                                       dtype=jnp.float32)
    b_scale1 = jax.random.normal(kbs, (embedding_dim,), dtype=jnp.float32)
    w_bias1 = 0.1 * jax.random.normal(kwb, (utt_emb_dim, embedding_dim),
                                      dtype=jnp.float32)
    b_bias1 = jax.random.normal(kbb, (embedding_dim,), dtype=jnp.float32)

    out1 = conditional_layer_norm(x, utt_emb, w_scale1, b_scale1, w_bias1,
                                  b_bias1, epsilon=1e-6)
    out1 = jax.block_until_ready(out1)
    ref1 = _reference(x, utt_emb, w_scale1, b_scale1, w_bias1, b_bias1)
    assert jnp.allclose(out1, ref1, atol=1e-5, rtol=1e-5)

    # Case 3: non-dividing shapes (B=3, T=200) with a (B,U,1) utt_emb to
    # exercise the cdiv grid's masked tail blocks on both the batch and T axes.
    B2, T2 = 3, 200
    x2 = jax.random.normal(kx2, (B2, embedding_dim, T2), dtype=jnp.float32)
    utt_emb2 = jax.random.normal(ku2, (B2, utt_emb_dim, 1), dtype=jnp.float32)
    out2 = conditional_layer_norm(x2, utt_emb2, w_scale1, b_scale1, w_bias1,
                                  b_bias1, epsilon=1e-6)
    out2 = jax.block_until_ready(out2)
    ref2 = _reference(x2, utt_emb2, w_scale1, b_scale1, w_bias1, b_bias1)
    assert out2.shape == (B2, embedding_dim, T2)
    assert jnp.allclose(out2, ref2, atol=1e-5, rtol=1e-5)

    print("KERNEL_OK")
</pallas_src>

<mosaic_0001>
module attributes {stable_mosaic.version = 11 : i64} {
  func.func @_cln_kernel(%arg0: i32, %arg1: i32, %arg2: memref<1x32x256xf32, #tpu.memory_space<vmem>>, %arg3: memref<1x2x32x1xf32, #tpu.memory_space<vmem>>, %arg4: memref<1x32x256xf32, #tpu.memory_space<vmem>>) attributes {dimension_semantics = [#tpu.dimension_semantics<parallel>, #tpu.dimension_semantics<parallel>], iteration_bounds = array<i64: 2, 1>, scalar_prefetch = 0 : i64, scratch_operands = 0 : i64, tpu.core_type = #tpu.core_type<tc>, window_params = [{transform_indices = @transform_0, window_bounds = array<i64: 1, 32, 256>}, {transform_indices = @transform_1, window_bounds = array<i64: 1, 2, 32, 1>}, {transform_indices = @transform_2, window_bounds = array<i64: 1, 32, 256>}]} {
    %c0 = arith.constant 0 : index
    %c0_0 = arith.constant 0 : index
    %c0_1 = arith.constant 0 : index
    %0 = vector.load %arg2[%c0, %c0_0, %c0_1] : memref<1x32x256xf32, #tpu.memory_space<vmem>>, vector<1x32x256xf32>
    %cst = arith.constant dense<0.000000e+00> : vector<1x256xf32>
    %1 = vector.multi_reduction <add>, %0, %cst [1] : vector<1x32x256xf32> to vector<1x256xf32>
    %2 = vector.shape_cast %1 : vector<1x256xf32> to vector<1x1x256xf32>
    %cst_2 = arith.constant 3.200000e+01 : f32
    %3 = vector.broadcast %cst_2 : f32 to vector<1x1x256xf32>
    %4 = arith.divf %2, %3 : vector<1x1x256xf32>
    %5 = vector.broadcast %4 : vector<1x1x256xf32> to vector<1x32x256xf32>
    %6 = arith.subf %0, %5 : vector<1x32x256xf32>
    %7 = arith.mulf %6, %6 : vector<1x32x256xf32>
    %cst_3 = arith.constant dense<0.000000e+00> : vector<1x256xf32>
    %8 = vector.multi_reduction <add>, %7, %cst_3 [1] : vector<1x32x256xf32> to vector<1x256xf32>
    %9 = vector.shape_cast %8 : vector<1x256xf32> to vector<1x1x256xf32>
    %cst_4 = arith.constant 3.200000e+01 : f32
    %10 = vector.broadcast %cst_4 : f32 to vector<1x1x256xf32>
    %11 = arith.divf %9, %10 : vector<1x1x256xf32>
    %cst_5 = arith.constant 9.99999997E-7 : f32
    %12 = vector.broadcast %cst_5 : f32 to vector<1x1x256xf32>
    %13 = arith.addf %11, %12 : vector<1x1x256xf32>
    %14 = math.rsqrt %13 : vector<1x1x256xf32>
    %15 = vector.broadcast %14 : vector<1x1x256xf32> to vector<1x32x256xf32>
    %16 = arith.mulf %6, %15 : vector<1x32x256xf32>
    %c0_6 = arith.constant 0 : index
    %c0_7 = arith.constant 0 : index
    %c0_8 = arith.constant 0 : index
    %c0_9 = arith.constant 0 : index
    %17 = vector.load %arg3[%c0_6, %c0_7, %c0_8, %c0_9] : memref<1x2x32x1xf32, #tpu.memory_space<vmem>>, vector<1x2x32x1xf32>
    %18 = vector.extract_strided_slice %17 {offsets = [0, 0, 0, 0], sizes = [1, 1, 32, 1], strides = [1, 1, 1, 1]} : vector<1x2x32x1xf32> to vector<1x1x32x1xf32>
    %19 = vector.shape_cast %18 : vector<1x1x32x1xf32> to vector<1x32x1xf32>
    %20 = vector.extract_strided_slice %17 {offsets = [0, 1, 0, 0], sizes = [1, 1, 32, 1], strides = [1, 1, 1, 1]} : vector<1x2x32x1xf32> to vector<1x1x32x1xf32>
    %21 = vector.shape_cast %20 : vector<1x1x32x1xf32> to vector<1x32x1xf32>
    %22 = vector.broadcast %19 : vector<1x32x1xf32> to vector<1x32x256xf32>
    %23 = arith.mulf %16, %22 : vector<1x32x256xf32>
    %24 = vector.broadcast %21 : vector<1x32x1xf32> to vector<1x32x256xf32>
    %25 = arith.addf %23, %24 : vector<1x32x256xf32>
    %c0_10 = arith.constant 0 : index
    %c0_11 = arith.constant 0 : index
    %c0_12 = arith.constant 0 : index
    %26 = vector.load %arg4[%c0_10, %c0_11, %c0_12] : memref<1x32x256xf32, #tpu.memory_space<vmem>>, vector<1x32x256xf32>
    tpu.vector_store %arg4[%c0_10, %c0_11, %c0_12], %25 {strides = array<i32>} : memref<1x32x256xf32, #tpu.memory_space<vmem>>, vector<1x32x256xf32>,
    return
  }
  func.func @transform_0(%arg0: i32, %arg1: i32) -> (i32, i32, i32) {
    %c0_i32 = arith.constant 0 : i32
    %c0_i32_0 = arith.constant 0 : i32
    return %arg0, %c0_i32, %arg1 : i32, i32, i32
  }
  func.func @transform_1(%arg0: i32, %arg1: i32) -> (i32, i32, i32, i32) {
    %c0_i32 = arith.constant 0 : i32
    %c0_i32_0 = arith.constant 0 : i32
    %c0_i32_1 = arith.constant 0 : i32
    %c0_i32_2 = arith.constant 0 : i32
    return %arg0, %c0_i32, %c0_i32_0, %c0_i32_1 : i32, i32, i32, i32
  }
  func.func @transform_2(%arg0: i32, %arg1: i32) -> (i32, i32, i32) {
    %c0_i32 = arith.constant 0 : i32
    %c0_i32_0 = arith.constant 0 : i32
    return %arg0, %c0_i32, %arg1 : i32, i32, i32
  }
}

</mosaic_0001>

<llo_original>
// kernel: tpu_custom_call.1
$region0: #{tpu_custom_call.1}
  #allocation0 [shape = 'u32[]', space=smem, size = 0x4, offset = 0x4, fixed_abs, tag = 'smem constant byte address 0x4 - core index']
  #allocation1 [shape = 'u32[144,128]{1,0:T(1,128)}', space=vmem, size = 0x12000, scoped, tag = 'internal scratch']
  %s0 = inlined_call_operand.vmem [shape: f32[2,32,256], index: 0, kind: input, shape index: {}]
  %s1 = inlined_call_operand.vmem [shape: f32[2,2,32,1], index: 1, kind: input, shape index: {}]
  %s2 = inlined_call_operand.hbm [shape: f32[2,32,256], index: 2, kind: output, shape index: {}]
  %s3 = sld [smem:[#allocation0]]
  $region41: #{tpu_custom_call.1} parent=0
    _
  %s5 = ssub.s32 1, %s3
  %s6 = scalar_select 0, %s5, %s3
  $region1: #{tpu_custom_call.1} parent=0
    #allocation2 [shape = 'u8[65536]{0}', space=vmem, size = 0x10000, scoped, tag = 'output window, operand 0']
    #allocation3 [shape = 's32[2]{0}', space=sflag, size = 0x8, scoped, tag = 'scoped memory for tpu_custom_call.1']
    %7 = vsyncpa [#allocation3], 0
    %s8 = scalar_lea.sflag [#allocation3], 1
    %9 = vsyncpa %s8, 0
    loop: start=0, step=1, limit=4
    $region2: #{tpu_custom_call.1} parent=1 // loop_pre_header
      _
    $region3: #{tpu_custom_call.1} parent=1 // loop_header
      %s11 = sphi 0, %s15
      %p12 = scmp.ge.s32.totalorder %s11, 4
      %s18 = sphi 0, %s30
      %s19 = sphi 0, %s26
      %s20 = sphi 0, %s18
      %s21 = sphi 0, %s19
      %s22 = sphi 0, %s20
      %s23 = sphi 0, %s21
      %s35 = sphi 0, %s37
      %s38 = sphi 0, %s35
      %s39 = sphi 0, %s38
      %s55 = sphi 0, %s39
      %s61 = sphi 0, %s63
      %s64 = sphi 0, %s61
      %s65 = sphi 0, %s64
      %s81 = sphi 0, %s65
      %s89 = sphi 0, %s91
      %s92 = sphi 0, %s89
      %s93 = sphi 0, %s92
      %s109 = sphi 0, %s93
    $region4: #{tpu_custom_call.1} parent=1 // loop_header_branch
      %14 = sbr.rel (%p12) target = $region8
    $region5: #{tpu_custom_call.1} parent=1 // loop_body
      %s16 = ssub.s32 %s11, 1
      %s17 = ssub.s32 %s11, 2
      %s24 = sadd.s32 1, %s19
      %p25 = scmp.ge.s32.totalorder %s24, 1
      %s26 = scalar_select %p25, 0, %s24
      %s27 = sadd.s32 1, %s18
      %s28 = scalar_select %p25, %s27, %s18
      %p29 = scmp.ge.s32.totalorder %s28, 2
      %s30 = scalar_select %p29, 0, %s28
      %s31 = ssub.s32 %s18, %s30
      %s32 = ssub.s32 %s19, %s26
      %s33 = sor.u32 %s31, %s32
      %p34 = scmp.eq.s32.totalorder %s33, 0
      %s36 = sadd.s32 %s35, 1
      %s37 = scalar_select %p34, %s35, %s36
      %p40 = pneg %p34
      %p41 = scmp.eq.s32.totalorder %s11, 1
      %p42 = por %p40, %p41
      %p43 = scmp.ne.s32.totalorder %s35, %s38
      %p44 = scmp.eq.s32.totalorder %s11, 0
      %p45 = por %p43, %p44
      %p46 = scmp.ne.s32.totalorder %s35, %s38
      %p47 = scmp.eq.s32.totalorder %s16, 1
      %p48 = por %p46, %p47
      %p49 = scmp.ne.s32.totalorder %s38, %s39
      %p50 = scmp.eq.s32.totalorder %s16, 0
      %p51 = por %p49, %p50
      %p52 = scmp.ne.s32.totalorder %s38, %s39
      %p53 = scmp.eq.s32.totalorder %s17, 1
      %p54 = por %p52, %p53
      %p56 = scmp.ne.s32.totalorder %s39, %s55
      %p57 = scmp.eq.s32.totalorder %s17, 0
      %p58 = por %p56, %p57
      %s59 = ssub.s32 %s18, %s30
      %p60 = scmp.eq.s32.totalorder %s59, 0
      %s62 = sadd.s32 %s61, 1
      %s63 = scalar_select %p60, %s61, %s62
      %p66 = pneg %p60
      %p67 = scmp.eq.s32.totalorder %s11, 1
      %p68 = por %p66, %p67
      %p69 = scmp.ne.s32.totalorder %s61, %s64
      %p70 = scmp.eq.s32.totalorder %s11, 0
      %p71 = por %p69, %p70
      %p72 = scmp.ne.s32.totalorder %s61, %s64
      %p73 = scmp.eq.s32.totalorder %s16, 1
      %p74 = por %p72, %p73
      %p75 = scmp.ne.s32.totalorder %s64, %s65
      %p76 = scmp.eq.s32.totalorder %s16, 0
      %p77 = por %p75, %p76
      %p78 = scmp.ne.s32.totalorder %s64, %s65
      %p79 = scmp.eq.s32.totalorder %s17, 1
      %p80 = por %p78, %p79
      %p82 = scmp.ne.s32.totalorder %s65, %s81
      %p83 = scmp.eq.s32.totalorder %s17, 0
      %p84 = por %p82, %p83
      %s85 = ssub.s32 %s18, %s30
      %s86 = ssub.s32 %s19, %s26
      %s87 = sor.u32 %s85, %s86
      %p88 = scmp.eq.s32.totalorder %s87, 0
      %s90 = sadd.s32 %s89, 1
      %s91 = scalar_select %p88, %s89, %s90
      %p94 = pneg %p88
      %p95 = scmp.eq.s32.totalorder %s11, 1
      %p96 = por %p94, %p95
      %p97 = scmp.ne.s32.totalorder %s89, %s92
      %p98 = scmp.eq.s32.totalorder %s11, 0
      %p99 = por %p97, %p98
      %p100 = scmp.ne.s32.totalorder %s89, %s92
      %p101 = scmp.eq.s32.totalorder %s16, 1
      %p102 = por %p100, %p101
      %p103 = scmp.ne.s32.totalorder %s92, %s93
      %p104 = scmp.eq.s32.totalorder %s16, 0
      %p105 = por %p103, %p104
      %p106 = scmp.ne.s32.totalorder %s92, %s93
      %p107 = scmp.eq.s32.totalorder %s17, 1
      %p108 = por %p106, %p107
      %p110 = scmp.ne.s32.totalorder %s93, %s109
      %p111 = scmp.eq.s32.totalorder %s17, 0
      %p112 = por %p110, %p111
      %p113 = scmp.le.s32.totalorder 1, %s11
      %p114 = scmp.lt.s32.totalorder %s11, 3
      %p115 = pnand %p113, %p114
      %p116 = pneg %p115
      // Predicated region
      $region9: #{tpu_custom_call.1} parent=5 // pred_check
        _
      $region10: #{tpu_custom_call.1} parent=5 // pred_check_branch
        %118 = sbr.rel (%p115) target = $region12
      $region11: #{tpu_custom_call.1} parent=5 // pred_region
        %s119 = ssub.s32 %s11, 1
      $region12: #{tpu_custom_call.1} parent=5 // pred_fallthru
        _
      %p120 = scmp.lt.s32.totalorder %s11, 2
      // Predicated region
      $region13: #{tpu_custom_call.1} parent=5 // pred_check
        %p121 = pneg %p120
      $region14: #{tpu_custom_call.1} parent=5 // pred_check_branch
        %123 = sbr.rel (%p121) target = $region16
      $region15: #{tpu_custom_call.1} parent=5 // pred_region
        // Predicated region
        $region17: #{tpu_custom_call.1} parent=15 // pred_check
          %p124 = pneg %p45
        $region18: #{tpu_custom_call.1} parent=15 // pred_check_branch
          %126 = sbr.rel (%p124) target = $region20
        $region19: #{tpu_custom_call.1} parent=15 // pred_region
          %s127 = smul.u32 2, %s19
          %p128 = scmp.lt.s32.totalorder %s18, 1
          %s129 = scalar_select %p128, %s18, 1
          %p130 = scmp.lt.s32.totalorder %s127, 1
          %s131 = scalar_select %p130, %s127, 1
          %s132 = smul.addr %s129, 8
          %s133 = sadd.s32 %s131, %s132
          %s134 = smul.addr %s133, 8
          %s135 = scalar_lea.vmem %s0, %s134
          %s136 = smul.u32 2, %s19
        $region20: #{tpu_custom_call.1} parent=15 // pred_fallthru
          _
        // Predicated region
        $region21: #{tpu_custom_call.1} parent=15 // pred_check
          %p137 = pneg %p71
        $region22: #{tpu_custom_call.1} parent=15 // pred_check_branch
          %139 = sbr.rel (%p137) target = $region24
        $region23: #{tpu_custom_call.1} parent=15 // pred_region
          %p140 = scmp.lt.s32.totalorder %s18, 1
          %s141 = scalar_select %p140, %s18, 1
          %s142 = smul.addr %s141, 8
          %s143 = smul.addr %s142, 8
          %s144 = scalar_lea.vmem %s1, %s143
        $region24: #{tpu_custom_call.1} parent=15 // pred_fallthru
          _
      $region16: #{tpu_custom_call.1} parent=5 // pred_fallthru
        _
      %p145 = scmp.le.s32.totalorder 1, %s11
      %p146 = scmp.lt.s32.totalorder %s11, 3
      %p147 = pnand %p145, %p146
      %p148 = pneg %p147
      // Predicated region
      $region25: #{tpu_custom_call.1} parent=5 // pred_check
        _
      $region26: #{tpu_custom_call.1} parent=5 // pred_check_branch
        %150 = sbr.rel (%p147) target = $region28
      $region27: #{tpu_custom_call.1} parent=5 // pred_region
        %s151 = ssub.s32 %s11, 1
        %s152 = smul.u32 2, %s21
        %p153 = scmp.lt.s32.totalorder %s20, 1
        %s154 = scalar_select %p153, %s20, 1
        %p155 = scmp.lt.s32.totalorder %s152, 1
        %s156 = scalar_select %p155, %s152, 1
        %s157 = smul.addr %s154, 8
        %s158 = sadd.s32 %s156, %s157
        %s159 = smul.addr %s158, 8
        %s160 = scalar_lea.vmem %s0, %s159
        %p161 = pneg %p51
        %p162 = pneg %p48
        %p163 = scmp.lt.s32.totalorder %s20, 1
        %s164 = scalar_select %p163, %s20, 1
        %s165 = smul.addr %s164, 8
        %s166 = smul.addr %s165, 8
        %s167 = scalar_lea.vmem %s1, %s166
        %p168 = pneg %p77
        %p169 = pneg %p74
        %p170 = pneg %p105
        %p171 = pneg %p102
        %s172 = sand.u32 %s92, 1
        %s173 = scalar_lea.sflag [#allocation3], %s172
        %s174 = sand.u32 %s92, 1
        %s175 = smul.addr %s174, 64
        %s176 = scalar_lea.vmem [#allocation2], %s175
        %s177 = smul.u32 2, %s21
        %p178 = scmp.lt.s32.totalorder %s20, 1
        %s179 = scalar_select %p178, %s20, 1
        %p180 = scmp.lt.s32.totalorder %s177, 1
        %s181 = scalar_select %p180, %s177, 1
        %s182 = smul.addr %s179, 8
        %s183 = sadd.s32 %s181, %s182
        %s184 = smul.addr %s183, 8
        %s185 = scalar_lea.vmem %s0, %s184
        %s186 = smul.u32 2, %s21
        %p187 = scmp.lt.s32.totalorder %s20, 1
        %s188 = scalar_select %p187, %s20, 1
        %s189 = smul.addr %s188, 8
        %s190 = smul.addr %s189, 8
        %s191 = scalar_lea.vmem %s1, %s190
        %s192 = smul.u32 2, %s21
        %v193 = vld [vmem:[%s185] sm:$0xff]
        %v194 = vld [vmem:[%s185 + $0x8] sm:$0xff]
        %v195 = vld [vmem:[%s185 + $0x10] sm:$0xff]
        %v196 = vld [vmem:[%s185 + $0x18] sm:$0xff]
        %v197 = vld [vmem:[%s185 + $0x20] sm:$0xff]
        %v198 = vld [vmem:[%s185 + $0x28] sm:$0xff]
        %v199 = vld [vmem:[%s185 + $0x30] sm:$0xff]
        %v200 = vld [vmem:[%s185 + $0x38] sm:$0xff]
        %v201 = vadd.f32 %v193, %v195
        %v202 = vadd.f32 %v201, %v197
        %v203 = vadd.f32 %v202, %v199
        %v204 = vrot.slane %v203, 4
        %v205 = vadd.f32 %v203, %v204
        %v206 = vrot.slane %v205, 2
        %v207 = vadd.f32 %v205, %v206
        %v208 = vrot.slane %v207, 1
        %v209 = vadd.f32 %v207, %v208
        %v210 = vadd.f32 %v194, %v196
        %v211 = vadd.f32 %v210, %v198
        %v212 = vadd.f32 %v211, %v200
        %v213 = vrot.slane %v212, 4
        %v214 = vadd.f32 %v212, %v213
        %v215 = vrot.slane %v214, 2
        %v216 = vadd.f32 %v214, %v215
        %v217 = vrot.slane %v216, 1
        %v218 = vadd.f32 %v216, %v217
        %v219 = vrcp.pop 32.0
        %v220 = vmul.f32 %v209, %v219
        %v221 = vmul.f32 %v218, %v219
        %v222 = vsub.f32 %v193, %v220
        %v223 = vsub.f32 %v194, %v221
        %v224 = vsub.f32 %v195, %v220
        %v225 = vsub.f32 %v196, %v221
        %v226 = vsub.f32 %v197, %v220
        %v227 = vsub.f32 %v198, %v221
        %v228 = vsub.f32 %v199, %v220
        %v229 = vsub.f32 %v200, %v221
        %v230 = vmul.f32 %v222, %v222
        %v231 = vmul.f32 %v223, %v223
        %v232 = vmul.f32 %v224, %v224
        %v233 = vmul.f32 %v225, %v225
        %v234 = vmul.f32 %v226, %v226
        %v235 = vmul.f32 %v227, %v227
        %v236 = vmul.f32 %v228, %v228
        %v237 = vmul.f32 %v229, %v229
        %v238 = vadd.f32 %v230, %v232
        %v239 = vadd.f32 %v238, %v234
        %v240 = vadd.f32 %v239, %v236
        %v241 = vrot.slane %v240, 4
        %v242 = vadd.f32 %v240, %v241
        %v243 = vrot.slane %v242, 2
        %v244 = vadd.f32 %v242, %v243
        %v245 = vrot.slane %v244, 1
        %v246 = vadd.f32 %v244, %v245
        %v247 = vadd.f32 %v231, %v233
        %v248 = vadd.f32 %v247, %v235
        %v249 = vadd.f32 %v248, %v237
        %v250 = vrot.slane %v249, 4
        %v251 = vadd.f32 %v249, %v250
        %v252 = vrot.slane %v251, 2
        %v253 = vadd.f32 %v251, %v252
        %v254 = vrot.slane %v253, 1
        %v255 = vadd.f32 %v253, %v254
        %v256 = vmul.f32 %v246, %v219
        %v257 = vmul.f32 %v255, %v219
        %v258 = vadd.f32 %v256, 1e-06
        %v259 = vadd.f32 %v257, 1e-06
        %v260 = vrsqrt.pop %v258
        %v261 = vrsqrt.pop %v259
        %v262 = vmul.f32 %v222, %v260
        %v263 = vmul.f32 %v223, %v261
        %v264 = vmul.f32 %v224, %v260
        %v265 = vmul.f32 %v225, %v261
        %v266 = vmul.f32 %v226, %v260
        %v267 = vmul.f32 %v227, %v261
        %v268 = vmul.f32 %v228, %v260
        %v269 = vmul.f32 %v229, %v261
        %v270 = vld [vmem:[%s191] sm:$0xff]
        %v271 = vld [vmem:[%s191 + $0x8] sm:$0xff]
        %v272 = vld [vmem:[%s191 + $0x10] sm:$0xff]
        %v273 = vld [vmem:[%s191 + $0x18] sm:$0xff]
        %v274 = vld [vmem:[%s191 + $0x20] sm:$0xff]
        %v275 = vld [vmem:[%s191 + $0x28] sm:$0xff]
        %v276 = vld [vmem:[%s191 + $0x30] sm:$0xff]
        %v277 = vld [vmem:[%s191 + $0x38] sm:$0xff]
        %279 = vset.pattern.permute.xlu0 0
        %280 = vperm.xlu0 %279, %v270
        %v281 = vpop.permute.xlu0 %280
        %284 = vset.pattern.permute.xlu0 0
        %285 = vperm.xlu0 %284, %v271
        %v286 = vpop.permute.xlu0 %285
        %289 = vset.pattern.permute.xlu0 0
        %290 = vperm.xlu0 %289, %v272
        %v291 = vpop.permute.xlu0 %290
        %294 = vset.pattern.permute.xlu0 0
        %295 = vperm.xlu0 %294, %v273
        %v296 = vpop.permute.xlu0 %295
        %v298 = vmul.f32 %v262, %v281
        %v299 = vmul.f32 %v263, %v281
        %v300 = vmul.f32 %v264, %v286
        %v301 = vmul.f32 %v265, %v286
        %v302 = vmul.f32 %v266, %v291
        %v303 = vmul.f32 %v267, %v291
        %v304 = vmul.f32 %v268, %v296
        %v305 = vmul.f32 %v269, %v296
        %307 = vset.pattern.permute.xlu0 0
        %308 = vperm.xlu0 %307, %v274
        %v309 = vpop.permute.xlu0 %308
        %312 = vset.pattern.permute.xlu0 0
        %313 = vperm.xlu0 %312, %v275
        %v314 = vpop.permute.xlu0 %313
        %317 = vset.pattern.permute.xlu0 0
        %318 = vperm.xlu0 %317, %v276
        %v319 = vpop.permute.xlu0 %318
        %322 = vset.pattern.permute.xlu0 0
        %323 = vperm.xlu0 %322, %v277
        %v324 = vpop.permute.xlu0 %323
        %v326 = vadd.f32 %v298, %v309
        %v327 = vadd.f32 %v299, %v309
        %v328 = vadd.f32 %v300, %v314
        %v329 = vadd.f32 %v301, %v314
        %v330 = vadd.f32 %v302, %v319
        %v331 = vadd.f32 %v303, %v319
        %v332 = vadd.f32 %v304, %v324
        %v333 = vadd.f32 %v305, %v324
        %334 = vst [vmem:[%s176] sm:$0xff] %v326
        %335 = vst [vmem:[%s176 + $0x8] sm:$0xff] %v327
        %336 = vst [vmem:[%s176 + $0x10] sm:$0xff] %v328
        %337 = vst [vmem:[%s176 + $0x18] sm:$0xff] %v329
        %338 = vst [vmem:[%s176 + $0x20] sm:$0xff] %v330
        %339 = vst [vmem:[%s176 + $0x28] sm:$0xff] %v331
        %340 = vst [vmem:[%s176 + $0x30] sm:$0xff] %v332
        %341 = vst [vmem:[%s176 + $0x38] sm:$0xff] %v333
        %s342 = sand.u32 %s92, 1
        %s343 = scalar_lea.sflag [#allocation3], %s342
        %s344 = sand.u32 %s92, 1
        %s345 = smul.addr %s344, 64
        %s346 = scalar_lea.vmem [#allocation2], %s345
        // Predicated region
        $region29: #{tpu_custom_call.1} parent=27 // pred_check
          %p347 = pneg %p102
        $region30: #{tpu_custom_call.1} parent=27 // pred_check_branch
          %349 = sbr.rel (%p347) target = $region32
        $region31: #{tpu_custom_call.1} parent=27 // pred_region
          %s350 = smul.u32 2, %s21
          %s352 = ssub.s32 1024, 1024
          %353 = vsyncadd %s343, %s352
          %s354 = smul.addr %s20, 8
          %s355 = sadd.s32 %s350, %s354
          %s356 = smul.addr %s355, 128
          %s357 = scalar_lea.hbm %s2, %s356
          %s358 = sshll.u32 %s346, 4
          %s359 = int_to_ptr.vmem [resolvable:$true] %s358
          %364 = dma.vmem_to_hbm [thread:$0]  %s359, 1024, %s357, %s343, 256, 256, 16
        $region32: #{tpu_custom_call.1} parent=27 // pred_fallthru
          _
      $region28: #{tpu_custom_call.1} parent=5 // pred_fallthru
        _
      %p365 = scmp.le.s32.totalorder 2, %s11
      // Predicated region
      $region33: #{tpu_custom_call.1} parent=5 // pred_check
        %p366 = pneg %p365
      $region34: #{tpu_custom_call.1} parent=5 // pred_check_branch
        %368 = sbr.rel (%p366) target = $region36
      $region35: #{tpu_custom_call.1} parent=5 // pred_region
        %s369 = ssub.s32 %s11, 2
        // Predicated region
        $region37: #{tpu_custom_call.1} parent=35 // pred_check
          %p370 = pneg %p108
        $region38: #{tpu_custom_call.1} parent=35 // pred_check_branch
          %372 = sbr.rel (%p370) target = $region40
        $region39: #{tpu_custom_call.1} parent=35 // pred_region
          %s373 = sand.u32 %s93, 1
          %s374 = scalar_lea.sflag [#allocation3], %s373
          %s375 = sand.u32 %s93, 1
          %s376 = smul.addr %s375, 64
          %s377 = scalar_lea.vmem [#allocation2], %s376
          %378 = dma.done %s374, 1024
        $region40: #{tpu_custom_call.1} parent=35 // pred_fallthru
          _
      $region36: #{tpu_custom_call.1} parent=5 // pred_fallthru
        _
    $region6: #{tpu_custom_call.1} parent=1 // loop_footer
      %s15 = sadd.s32 1, %s11
    $region7: #{tpu_custom_call.1} parent=1 // loop_footer_branch
      %10 = sbr.rel target = $region3
    $region8: #{tpu_custom_call.1} parent=1 // loop_exit
      _
    %379 = vsyncpa [#allocation3], 1
    %s380 = scalar_lea.sflag [#allocation3], 1
    %381 = vsyncpa %s380, 1

</llo_original>
